<compile_context>
chip_gen: v7x
topology: tpu7x:2x2x1
jax: 0.10.0
libtpu: 0.0.40
codegen_flags: <defaults>
</compile_context>

<pallas_src>
import jax
import jax.numpy as jnp
from jax.experimental import pallas as pl
from jax.experimental.pallas import tpu as pltpu


def _round_up(a, m):
    return ((a + m - 1) // m) * m


def _resblock_proj_kernel(x_ref, wcat_ref, bcat_ref, w2_ref, o_ref):
    """Projection shortcut. wcat = [W1 | Ws], bcat = [b1 | b2 + bs]."""
    n = w2_ref.shape[0]
    z = jnp.dot(x_ref[...], wcat_ref[...],
                preferred_element_type=jnp.float32) + bcat_ref[...]
    h = jnp.maximum(z[:, :n], 0.0)          # relu(fc1(x)); 128-aligned slice
    res = z[:, n:]                          # x @ Ws + bs + b2
    out = jnp.dot(h.astype(w2_ref.dtype), w2_ref[...],
                  preferred_element_type=jnp.float32) + res
    o_ref[...] = jnp.maximum(out, 0.0).astype(o_ref.dtype)


def _resblock_identity_kernel(x_ref, w1_ref, b1_ref, w2_ref, b2_ref, o_ref):
    """Identity shortcut: residual = x (no shortcut matmul)."""
    x = x_ref[...]
    h = jnp.dot(x, w1_ref[...], preferred_element_type=jnp.float32) + b1_ref[...]
    h = jnp.maximum(h, 0.0)
    out = jnp.dot(h.astype(w2_ref.dtype), w2_ref[...],
                  preferred_element_type=jnp.float32)
    out = out + x.astype(jnp.float32) + b2_ref[...]
    o_ref[...] = jnp.maximum(out, 0.0).astype(o_ref.dtype)


def residual_block_sum(x, params, *, tm=512, mxu_dtype=None):
    """x: (B, input_dim) f32. params from init_params(). Returns (B, output_dim) f32."""
    B, K = x.shape
    N = params["w1"].shape[1]
    identity_shortcut = "ws" not in params

    # Lane-dense / sublane-aligned padding (zero padding is exact for linear ops).
    K_pad = _round_up(K, 128)
    N_pad = _round_up(N, 128)
    TM = max(8, min(_round_up(tm, 8), _round_up(B, 8)))
    B_pad = _round_up(B, TM)

    def pad2(a, rows, cols):
        return jnp.pad(a, ((0, rows - a.shape[0]), (0, cols - a.shape[1])))

    xp = pad2(x, B_pad, K_pad)
    w1 = pad2(params["w1"], K_pad, N_pad)
    b1 = pad2(params["b1"], 1, N_pad)
    w2 = pad2(params["w2"], N_pad, N_pad)

    if identity_shortcut:
        b2 = pad2(params["b2"], 1, N_pad)
    else:
        ws = pad2(params["ws"], K_pad, N_pad)
        # Fuse fc1 and shortcut into one matmul; fold fc2/shortcut biases.
        wcat = jnp.concatenate([w1, ws], axis=1)                       # (K, 2N)
        bcat = jnp.concatenate(
            [b1, pad2(params["b2"] + params["bs"], 1, N_pad)], axis=1)  # (1, 2N)

    # Optionally feed the MXU in bf16 (v6e/v7x); biases/accumulation stay f32.
    if mxu_dtype is not None:
        xp = xp.astype(mxu_dtype)
        w2 = w2.astype(mxu_dtype)
        if identity_shortcut:
            w1 = w1.astype(mxu_dtype)
        else:
            wcat = wcat.astype(mxu_dtype)

    x_spec = pl.BlockSpec((TM, K_pad), lambda i: (i, 0))
    out_spec = pl.BlockSpec((TM, N_pad), lambda i: (i, 0))

    def resident(shape):  # weights/biases stay put across grid steps
        return pl.BlockSpec(shape, lambda i: (0, 0))

    if identity_shortcut:
        kernel = _resblock_identity_kernel
        operands = (xp, w1, b1, w2, b2)
        in_specs = [x_spec,
                    resident((K_pad, N_pad)), resident((1, N_pad)),
                    resident((N_pad, N_pad)), resident((1, N_pad))]
        flops = 2 * B_pad * (K_pad * N_pad + N_pad * N_pad)
    else:
        kernel = _resblock_proj_kernel
        operands = (xp, wcat, bcat, w2)
        in_specs = [x_spec,
                    resident((K_pad, 2 * N_pad)), resident((1, 2 * N_pad)),
                    resident((N_pad, N_pad))]
        flops = 2 * B_pad * (K_pad * 2 * N_pad + N_pad * N_pad)

    bytes_accessed = (
        sum(int(a.size) * a.dtype.itemsize for a in operands)
        + B_pad * N_pad * 4
    )
    cost = pl.CostEstimate(flops=flops, transcendentals=0,
                           bytes_accessed=bytes_accessed)

    out_padded = pl.pallas_call(
        kernel,
        out_shape=jax.ShapeDtypeStruct((B_pad, N_pad), jnp.float32),
        grid=(B_pad // TM,),
        in_specs=in_specs,
        out_specs=out_spec,
        compiler_params=pltpu.CompilerParams(
            dimension_semantics=("parallel",)),
        cost_estimate=cost,
    )(*operands)

    return out_padded[:B, :N]


def init_params(key, input_dim, output_dim):
    """Synthetic init mimicking nn.Linear's uniform(-1/sqrt(fan_in), 1/sqrt(fan_in)).

    Weights stored transposed relative to PyTorch: shape (in, out).
    When input_dim == output_dim the shortcut is the identity (no ws/bs).
    """
    k1, k2, k3, k4, k5, k6 = jax.random.split(key, 6)

    def lin(kw, kb, fan_in, fan_out):
        bound = 1.0 / jnp.sqrt(jnp.float32(fan_in))
        w = jax.random.uniform(kw, (fan_in, fan_out), jnp.float32, -bound, bound)
        b = jax.random.uniform(kb, (1, fan_out), jnp.float32, -bound, bound)
        return w, b

    w1, b1 = lin(k1, k2, input_dim, output_dim)
    w2, b2 = lin(k3, k4, output_dim, output_dim)
    params = {"w1": w1, "b1": b1, "w2": w2, "b2": b2}

    if input_dim != output_dim:
        ws, bs = lin(k5, k6, input_dim, output_dim)
        params["ws"] = ws
        params["bs"] = bs

    return params


def reference(x, p):
    """Pure-JAX reference of the PyTorch forward."""
    if "ws" in p:
        residual = x @ p["ws"] + p["bs"]
    else:
        residual = x
    out = jnp.maximum(x @ p["w1"] + p["b1"], 0.0)
    out = out @ p["w2"] + p["b2"]
    return jnp.maximum(out + residual, 0.0)


if __name__ == "__main__":
    key = jax.random.PRNGKey(0)
    kx1, kp1, kx2, kp2 = jax.random.split(key, 4)

    # Case 1: projection shortcut (input_dim != output_dim)
    input_dim, output_dim, batch = 32, 64, 8
    x = jax.random.normal(kx1, (batch, input_dim), dtype=jnp.float32)
    params = init_params(kp1, input_dim, output_dim)
    out = jax.block_until_ready(residual_block_sum(x, params))
    ref = reference(x, params)
    assert out.shape == (batch, output_dim)
    assert jnp.allclose(out, ref, atol=1e-5, rtol=1e-5), "proj-shortcut mismatch"

    # Case 2: identity shortcut (input_dim == output_dim) — no shortcut matmul
    dim = 64
    x2 = jax.random.normal(kx2, (batch, dim), dtype=jnp.float32)
    params2 = init_params(kp2, dim, dim)
    out2 = jax.block_until_ready(residual_block_sum(x2, params2))
    ref2 = reference(x2, params2)
    assert out2.shape == (batch, dim)
    assert jnp.allclose(out2, ref2, atol=1e-5, rtol=1e-5), "identity-shortcut mismatch"

    print("KERNEL_OK")
</pallas_src>

<mosaic_0001>
module attributes {stable_mosaic.version = 11 : i64} {
  func.func @_resblock_proj_kernel(%arg0: i32, %arg1: memref<8x128xf32, #tpu.memory_space<vmem>>, %arg2: memref<128x256xf32, #tpu.memory_space<vmem>>, %arg3: memref<1x256xf32, #tpu.memory_space<vmem>>, %arg4: memref<128x128xf32, #tpu.memory_space<vmem>>, %arg5: memref<8x128xf32, #tpu.memory_space<vmem>>) attributes {dimension_semantics = [#tpu.dimension_semantics<parallel>], iteration_bounds = array<i64: 1>, scalar_prefetch = 0 : i64, scratch_operands = 0 : i64, tpu.core_type = #tpu.core_type<tc>, window_params = [{transform_indices = @transform_0, window_bounds = array<i64: 8, 128>}, {pipeline_mode = #tpu.pipeline_mode<synchronous>, transform_indices = @transform_1, window_bounds = array<i64: 128, 256>}, {pipeline_mode = #tpu.pipeline_mode<synchronous>, transform_indices = @transform_2, window_bounds = array<i64: 1, 256>}, {pipeline_mode = #tpu.pipeline_mode<synchronous>, transform_indices = @transform_3, window_bounds = array<i64: 128, 128>}, {transform_indices = @transform_4, window_bounds = array<i64: 8, 128>}]} {
    %c0 = arith.constant 0 : index
    %c0_0 = arith.constant 0 : index
    %0 = vector.load %arg1[%c0, %c0_0] : memref<8x128xf32, #tpu.memory_space<vmem>>, vector<8x128xf32>
    %c0_1 = arith.constant 0 : index
    %c0_2 = arith.constant 0 : index
    %1 = vector.load %arg2[%c0_1, %c0_2] : memref<128x256xf32, #tpu.memory_space<vmem>>, vector<128x256xf32>
    %cst = arith.constant dense<0.000000e+00> : vector<8x256xf32>
    %2 = tpu.matmul %0, %1, %cst {dimension_numbers = #tpu.dot_dimension_numbers<[1], [0], [0], [1], [0, 0, 1, 1], [], []>} : vector<8x128xf32>, vector<128x256xf32>, vector<8x256xf32> -> vector<8x256xf32>
    %c0_3 = arith.constant 0 : index
    %c0_4 = arith.constant 0 : index
    %3 = vector.load %arg3[%c0_3, %c0_4] : memref<1x256xf32, #tpu.memory_space<vmem>>, vector<1x256xf32>
    %4 = vector.broadcast %3 : vector<1x256xf32> to vector<8x256xf32>
    %5 = arith.addf %2, %4 : vector<8x256xf32>
    %6 = vector.extract_strided_slice %5 {offsets = [0, 0], sizes = [8, 128], strides = [1, 1]} : vector<8x256xf32> to vector<8x128xf32>
    %cst_5 = arith.constant 0.000000e+00 : f32
    %7 = vector.broadcast %cst_5 : f32 to vector<8x128xf32>
    %8 = arith.maximumf %6, %7 : vector<8x128xf32>
    %9 = vector.extract_strided_slice %5 {offsets = [0, 128], sizes = [8, 128], strides = [1, 1]} : vector<8x256xf32> to vector<8x128xf32>
    %c0_6 = arith.constant 0 : index
    %c0_7 = arith.constant 0 : index
    %10 = vector.load %arg4[%c0_6, %c0_7] : memref<128x128xf32, #tpu.memory_space<vmem>>, vector<128x128xf32>
    %cst_8 = arith.constant dense<0.000000e+00> : vector<8x128xf32>
    %11 = tpu.matmul %8, %10, %cst_8 {dimension_numbers = #tpu.dot_dimension_numbers<[1], [0], [0], [1], [0, 0, 1, 1], [], []>} : vector<8x128xf32>, vector<128x128xf32>, vector<8x128xf32> -> vector<8x128xf32>
    %12 = arith.addf %11, %9 : vector<8x128xf32>
    %cst_9 = arith.constant 0.000000e+00 : f32
    %13 = vector.broadcast %cst_9 : f32 to vector<8x128xf32>
    %14 = arith.maximumf %12, %13 : vector<8x128xf32>
    %c0_10 = arith.constant 0 : index
    %c0_11 = arith.constant 0 : index
    %15 = vector.load %arg5[%c0_10, %c0_11] : memref<8x128xf32, #tpu.memory_space<vmem>>, vector<8x128xf32>
    tpu.vector_store %arg5[%c0_10, %c0_11], %14 {strides = array<i32>} : memref<8x128xf32, #tpu.memory_space<vmem>>, vector<8x128xf32>,
    return
  }
  func.func @transform_0(%arg0: i32) -> (i32, i32) {
    %c0_i32 = arith.constant 0 : i32
    %c0_i32_0 = arith.constant 0 : i32
    return %arg0, %c0_i32 : i32, i32
  }
  func.func @transform_1(%arg0: i32) -> (i32, i32) {
    %c0_i32 = arith.constant 0 : i32
    %c0_i32_0 = arith.constant 0 : i32
    %c0_i32_1 = arith.constant 0 : i32
    return %c0_i32, %c0_i32_0 : i32, i32
  }
  func.func @transform_2(%arg0: i32) -> (i32, i32) {
    %c0_i32 = arith.constant 0 : i32
    %c0_i32_0 = arith.constant 0 : i32
    %c0_i32_1 = arith.constant 0 : i32
    return %c0_i32, %c0_i32_0 : i32, i32
  }
  func.func @transform_3(%arg0: i32) -> (i32, i32) {
    %c0_i32 = arith.constant 0 : i32
    %c0_i32_0 = arith.constant 0 : i32
    %c0_i32_1 = arith.constant 0 : i32
    return %c0_i32, %c0_i32_0 : i32, i32
  }
  func.func @transform_4(%arg0: i32) -> (i32, i32) {
    %c0_i32 = arith.constant 0 : i32
    %c0_i32_0 = arith.constant 0 : i32
    return %arg0, %c0_i32 : i32, i32
  }
}

</mosaic_0001>

<llo_original>
// kernel: tpu_custom_call.1
$region0: #{tpu_custom_call.1}
  #allocation0 [shape = 'u32[]', space=smem, size = 0x4, offset = 0x4, fixed_abs, tag = 'smem constant byte address 0x4 - core index']
  #allocation1 [shape = 'u32[144,128]{1,0:T(1,128)}', space=vmem, size = 0x12000, scoped, tag = 'internal scratch']
  %s0 = inlined_call_operand.hbm [shape: f32[8,128], index: 0, kind: input, shape index: {}]
  %s1 = inlined_call_operand.hbm [shape: f32[128,256], index: 1, kind: input, shape index: {}]
  %s2 = inlined_call_operand.vmem [shape: f32[1,256], index: 2, kind: input, shape index: {}]
  %s3 = inlined_call_operand.hbm [shape: f32[128,128], index: 3, kind: input, shape index: {}]
  %s4 = inlined_call_operand.hbm [shape: f32[8,128], index: 4, kind: output, shape index: {}]
  %s5 = sld [smem:[#allocation0]]
  $region38: #{tpu_custom_call.1} parent=0
    _
  %s7 = ssub.s32 1, %s5
  %s8 = scalar_select 0, %s7, %s5
  $region1: #{tpu_custom_call.1} parent=0
    #allocation2 [shape = 'u8[4096]{0}', space=vmem, size = 0x1000, scoped, tag = 'input window, operand 0, single buffered']
    #allocation3 [shape = 's32[1]{0}', space=sflag, size = 0x4, scoped, tag = 'scoped memory for tpu_custom_call.1']
    #allocation4 [shape = 's32[1]{0}', space=sflag, size = 0x4, scoped, tag = 'scoped memory for tpu_custom_call.1']
    #allocation5 [shape = 'u8[131072]{0}', space=vmem, size = 0x20000, scoped, tag = 'input window, operand 1, single buffered']
    #allocation6 [shape = 's32[1]{0}', space=sflag, size = 0x4, scoped, tag = 'scoped memory for tpu_custom_call.1']
    #allocation7 [shape = 'u8[65536]{0}', space=vmem, size = 0x10000, scoped, tag = 'input window, operand 3, single buffered']
    #allocation8 [shape = 'u8[4096]{0}', space=vmem, size = 0x1000, scoped, tag = 'output window, operand 0, single buffered']
    %9 = vsyncpa [#allocation3], 0
    %10 = vsyncpa [#allocation6], 0
    %11 = vsyncpa [#allocation4], 0
    // Predicated region
    $region2: #{tpu_custom_call.1} parent=1 // pred_check
      _
    $region3: #{tpu_custom_call.1} parent=1 // pred_check_branch
      %13 = sbr.rel (0) target = $region5
    $region4: #{tpu_custom_call.1} parent=1 // pred_region
      %s15 = ssub.s32 128, 128
      %16 = vsyncadd [#allocation3], %s15
      %s18 = sshll.u32 [#allocation2], 4
      %s19 = int_to_ptr.vmem [resolvable:$true] %s18
      %21 = dma.hbm_to_vmem [thread:$0]  %s0, 128, %s19, [#allocation3]
    $region5: #{tpu_custom_call.1} parent=1 // pred_fallthru
      _
    // Predicated region
    $region6: #{tpu_custom_call.1} parent=1 // pred_check
      _
    $region7: #{tpu_custom_call.1} parent=1 // pred_check_branch
      %23 = sbr.rel (0) target = $region9
    $region8: #{tpu_custom_call.1} parent=1 // pred_region
      %s25 = ssub.s32 4096, 4096
      %26 = vsyncadd [#allocation6], %s25
      %s27 = sshll.u32 [#allocation5], 4
      %s28 = int_to_ptr.vmem [resolvable:$true] %s27
      %33 = dma.hbm_to_vmem [thread:$0]  %s1, 4096, %s28, [#allocation6], 256, 256, 16
    $region9: #{tpu_custom_call.1} parent=1 // pred_fallthru
      _
    // Predicated region
    $region10: #{tpu_custom_call.1} parent=1 // pred_check
      _
    $region11: #{tpu_custom_call.1} parent=1 // pred_check_branch
      %35 = sbr.rel (0) target = $region13
    $region12: #{tpu_custom_call.1} parent=1 // pred_region
      _
    $region13: #{tpu_custom_call.1} parent=1 // pred_fallthru
      _
    // Predicated region
    $region14: #{tpu_custom_call.1} parent=1 // pred_check
      _
    $region15: #{tpu_custom_call.1} parent=1 // pred_check_branch
      %37 = sbr.rel (0) target = $region17
    $region16: #{tpu_custom_call.1} parent=1 // pred_region
      %s39 = ssub.s32 2048, 2048
      %40 = vsyncadd [#allocation6], %s39
      %s41 = sshll.u32 [#allocation7], 4
      %s42 = int_to_ptr.vmem [resolvable:$true] %s41
      %47 = dma.hbm_to_vmem [thread:$0]  %s3, 2048, %s42, [#allocation6], 128, 128, 8
    $region17: #{tpu_custom_call.1} parent=1 // pred_fallthru
      _
    // Predicated region
    $region18: #{tpu_custom_call.1} parent=1 // pred_check
      _
    $region19: #{tpu_custom_call.1} parent=1 // pred_check_branch
      %49 = sbr.rel (0) target = $region21
    $region20: #{tpu_custom_call.1} parent=1 // pred_region
      %50 = dma.done [#allocation3], 128
    $region21: #{tpu_custom_call.1} parent=1 // pred_fallthru
      _
    // Predicated region
    $region22: #{tpu_custom_call.1} parent=1 // pred_check
      _
    $region23: #{tpu_custom_call.1} parent=1 // pred_check_branch
      %52 = sbr.rel (0) target = $region25
    $region24: #{tpu_custom_call.1} parent=1 // pred_region
      %53 = dma.done [#allocation6], 4096
    $region25: #{tpu_custom_call.1} parent=1 // pred_fallthru
      _
    // Predicated region
    $region26: #{tpu_custom_call.1} parent=1 // pred_check
      _
    $region27: #{tpu_custom_call.1} parent=1 // pred_check_branch
      %55 = sbr.rel (0) target = $region29
    $region28: #{tpu_custom_call.1} parent=1 // pred_region
      %56 = dma.done [#allocation6], 2048
    $region29: #{tpu_custom_call.1} parent=1 // pred_fallthru
      _
    %v57 = vld [vmem:[#allocation2] sm:$0xff]
    %v58 = vld [vmem:[#allocation5] sm:$0xff]
    %v59 = vld [vmem:[#allocation5 + $0x8] sm:$0xff]
    %v60 = vld [vmem:[#allocation5 + $0x10] sm:$0xff]
    %v61 = vld [vmem:[#allocation5 + $0x18] sm:$0xff]
    %v62 = vld [vmem:[#allocation5 + $0x20] sm:$0xff]
    %v63 = vld [vmem:[#allocation5 + $0x28] sm:$0xff]
    %v64 = vld [vmem:[#allocation5 + $0x30] sm:$0xff]
    %v65 = vld [vmem:[#allocation5 + $0x38] sm:$0xff]
    %v66 = vld [vmem:[#allocation5 + $0x40] sm:$0xff]
    %v67 = vld [vmem:[#allocation5 + $0x48] sm:$0xff]
    %v68 = vld [vmem:[#allocation5 + $0x50] sm:$0xff]
    %v69 = vld [vmem:[#allocation5 + $0x58] sm:$0xff]
    %v70 = vld [vmem:[#allocation5 + $0x60] sm:$0xff]
    %v71 = vld [vmem:[#allocation5 + $0x68] sm:$0xff]
    %v72 = vld [vmem:[#allocation5 + $0x70] sm:$0xff]
    %v73 = vld [vmem:[#allocation5 + $0x78] sm:$0xff]
    %v74 = vld [vmem:[#allocation5 + $0x80] sm:$0xff]
    %v75 = vld [vmem:[#allocation5 + $0x88] sm:$0xff]
    %v76 = vld [vmem:[#allocation5 + $0x90] sm:$0xff]
    %v77 = vld [vmem:[#allocation5 + $0x98] sm:$0xff]
    %v78 = vld [vmem:[#allocation5 + $0xa0] sm:$0xff]
    %v79 = vld [vmem:[#allocation5 + $0xa8] sm:$0xff]
    %v80 = vld [vmem:[#allocation5 + $0xb0] sm:$0xff]
    %v81 = vld [vmem:[#allocation5 + $0xb8] sm:$0xff]
    %v82 = vld [vmem:[#allocation5 + $0xc0] sm:$0xff]
    %v83 = vld [vmem:[#allocation5 + $0xc8] sm:$0xff]
    %v84 = vld [vmem:[#allocation5 + $0xd0] sm:$0xff]
    %v85 = vld [vmem:[#allocation5 + $0xd8] sm:$0xff]
    %v86 = vld [vmem:[#allocation5 + $0xe0] sm:$0xff]
    %v87 = vld [vmem:[#allocation5 + $0xe8] sm:$0xff]
    %v88 = vld [vmem:[#allocation5 + $0xf0] sm:$0xff]
    %v89 = vld [vmem:[#allocation5 + $0xf8] sm:$0xff]
    %v90 = vld [vmem:[%s2] sm:$0x3]
    %v92 = vlaneseq
    %v93 = vshrl.u32 %v92, 7
    %v94 = vsub.s32 0, %v93
    %v95 = vrot.slane %v90, %v94
    %v96 = vlaneseq
    %v97 = vshrl.u32 %v96, 7
    %v98 = vsub.s32 1, %v97
    %v99 = vrot.slane %v90, %v98
    %102 = vmatprep.subr.mxu0 %v59
    %103 = vmatpush1.msra.mxu0 %v58
    %104 = vmatprep.subr.mxu0 %v61
    %105 = vmatpush1.msra.mxu0 %v60
    %106 = vmatprep.subr.mxu0 %v63
    %107 = vmatpush1.msra.mxu0 %v62
    %108 = vmatprep.subr.mxu0 %v65
    %109 = vmatpush1.msra.mxu0 %v64
    %110 = vmatprep.subr.mxu0 %v67
    %111 = vmatpush1.msra.mxu0 %v66
    %112 = vmatprep.subr.mxu0 %v69
    %113 = vmatpush1.msra.mxu0 %v68
    %114 = vmatprep.subr.mxu0 %v71
    %115 = vmatpush1.msra.mxu0 %v70
    %116 = vmatprep.subr.mxu0 %v73
    %117 = vmatpush1.msra.mxu0 %v72
    %118 = vmatprep.subr.mxu0 %v75
    %119 = vmatpush1.msra.mxu0 %v74
    %120 = vmatprep.subr.mxu0 %v77
    %121 = vmatpush1.msra.mxu0 %v76
    %122 = vmatprep.subr.mxu0 %v79
    %123 = vmatpush1.msra.mxu0 %v78
    %124 = vmatprep.subr.mxu0 %v81
    %125 = vmatpush1.msra.mxu0 %v80
    %126 = vmatprep.subr.mxu0 %v83
    %127 = vmatpush1.msra.mxu0 %v82
    %128 = vmatprep.subr.mxu0 %v85
    %129 = vmatpush1.msra.mxu0 %v84
    %130 = vmatprep.subr.mxu0 %v87
    %131 = vmatpush1.msra.mxu0 %v86
    %132 = vmatprep.subr.mxu0 %v89
    %133 = vmatpush1.msra.mxu0 %v88
    %134 = vmatprep.subr.mxu0 0.0
    %135 = vmatpush1.msra.mxu0 0.0
    %136 = vmatprep.subr.mxu0 0.0
    %137 = vmatpush1.msra.mxu0 0.0
    %138 = vmatprep.subr.mxu0 0.0
    %139 = vmatpush1.msra.mxu0 0.0
    %140 = vmatprep.subr.mxu0 0.0
    %141 = vmatpush1.msra.mxu0 0.0
    %142 = vmatprep.subr.mxu0 0.0
    %143 = vmatpush1.msra.mxu0 0.0
    %144 = vmatprep.subr.mxu0 0.0
    %145 = vmatpush1.msra.mxu0 0.0
    %146 = vmatprep.subr.mxu0 0.0
    %147 = vmatpush1.msra.mxu0 0.0
    %148 = vmatprep.subr.mxu0 0.0
    %149 = vmatpush1.msra.mxu0 0.0
    %150 = vmatprep.subr.mxu0 0.0
    %151 = vmatpush1.msra.mxu0 0.0
    %152 = vmatprep.subr.mxu0 0.0
    %153 = vmatpush1.msra.mxu0 0.0
    %154 = vmatprep.subr.mxu0 0.0
    %155 = vmatpush1.msra.mxu0 0.0
    %156 = vmatprep.subr.mxu0 0.0
    %157 = vmatpush1.msra.mxu0 0.0
    %158 = vmatprep.subr.mxu0 0.0
    %159 = vmatpush1.msra.mxu0 0.0
    %160 = vmatprep.subr.mxu0 0.0
    %161 = vmatpush1.msra.mxu0 0.0
    %162 = vmatprep.subr.mxu0 0.0
    %163 = vmatpush1.msra.mxu0 0.0
    %164 = vmatprep.subr.mxu0 0.0
    %165 = vmatpush1.msra.mxu0 0.0
    %166 = vmatprep.mubr.f32.mxu0 0.0
    %167 = vmatmul.mubr.f32.gmra.mrb[0].mxu0 %v57
    %v168 = vpop.f32.mrb[0].mxu0
    %v169 = vadd.f32 %v95, %v168
    %v170 = vpop.f32.mrb[0].mxu0
    %v171 = vadd.f32 %v99, %v170
    %172 = vdwg.mxu0
    %v173 = vmax.f32 %v169, 0.0
    %v174 = vld [vmem:[#allocation7] sm:$0xff]
    %v175 = vld [vmem:[#allocation7 + $0x8] sm:$0xff]
    %v176 = vld [vmem:[#allocation7 + $0x10] sm:$0xff]
    %v177 = vld [vmem:[#allocation7 + $0x18] sm:$0xff]
    %v178 = vld [vmem:[#allocation7 + $0x20] sm:$0xff]
    %v179 = vld [vmem:[#allocation7 + $0x28] sm:$0xff]
    %v180 = vld [vmem:[#allocation7 + $0x30] sm:$0xff]
    %v181 = vld [vmem:[#allocation7 + $0x38] sm:$0xff]
    %v182 = vld [vmem:[#allocation7 + $0x40] sm:$0xff]
    %v183 = vld [vmem:[#allocation7 + $0x48] sm:$0xff]
    %v184 = vld [vmem:[#allocation7 + $0x50] sm:$0xff]
    %v185 = vld [vmem:[#allocation7 + $0x58] sm:$0xff]
    %v186 = vld [vmem:[#allocation7 + $0x60] sm:$0xff]
    %v187 = vld [vmem:[#allocation7 + $0x68] sm:$0xff]
    %v188 = vld [vmem:[#allocation7 + $0x70] sm:$0xff]
    %v189 = vld [vmem:[#allocation7 + $0x78] sm:$0xff]
    %190 = vmatprep.subr.mxu0 0.0
    %191 = vmatpush1.msra.mxu0 %v174
    %192 = vmatprep.subr.mxu0 0.0
    %193 = vmatpush1.msra.mxu0 %v175
    %194 = vmatprep.subr.mxu0 0.0
    %195 = vmatpush1.msra.mxu0 %v176
    %196 = vmatprep.subr.mxu0 0.0
    %197 = vmatpush1.msra.mxu0 %v177
    %198 = vmatprep.subr.mxu0 0.0
    %199 = vmatpush1.msra.mxu0 %v178
    %200 = vmatprep.subr.mxu0 0.0
    %201 = vmatpush1.msra.mxu0 %v179
    %202 = vmatprep.subr.mxu0 0.0
    %203 = vmatpush1.msra.mxu0 %v180
    %204 = vmatprep.subr.mxu0 0.0
    %205 = vmatpush1.msra.mxu0 %v181
    %206 = vmatprep.subr.mxu0 0.0
    %207 = vmatpush1.msra.mxu0 %v182
    %208 = vmatprep.subr.mxu0 0.0
    %209 = vmatpush1.msra.mxu0 %v183
    %210 = vmatprep.subr.mxu0 0.0
    %211 = vmatpush1.msra.mxu0 %v184
    %212 = vmatprep.subr.mxu0 0.0
    %213 = vmatpush1.msra.mxu0 %v185
    %214 = vmatprep.subr.mxu0 0.0
    %215 = vmatpush1.msra.mxu0 %v186
    %216 = vmatprep.subr.mxu0 0.0
    %217 = vmatpush1.msra.mxu0 %v187
    %218 = vmatprep.subr.mxu0 0.0
    %219 = vmatpush1.msra.mxu0 %v188
    %220 = vmatprep.subr.mxu0 0.0
    %221 = vmatpush1.msra.mxu0 %v189
    %222 = vmatprep.subr.mxu0 0.0
    %223 = vmatpush1.msra.mxu0 0.0
    %224 = vmatprep.subr.mxu0 0.0
    %225 = vmatpush1.msra.mxu0 0.0
    %226 = vmatprep.subr.mxu0 0.0
    %227 = vmatpush1.msra.mxu0 0.0
    %228 = vmatprep.subr.mxu0 0.0
    %229 = vmatpush1.msra.mxu0 0.0
    %230 = vmatprep.subr.mxu0 0.0
    %231 = vmatpush1.msra.mxu0 0.0
    %232 = vmatprep.subr.mxu0 0.0
    %233 = vmatpush1.msra.mxu0 0.0
    %234 = vmatprep.subr.mxu0 0.0
    %235 = vmatpush1.msra.mxu0 0.0
    %236 = vmatprep.subr.mxu0 0.0
    %237 = vmatpush1.msra.mxu0 0.0
    %238 = vmatprep.subr.mxu0 0.0
    %239 = vmatpush1.msra.mxu0 0.0
    %240 = vmatprep.subr.mxu0 0.0
    %241 = vmatpush1.msra.mxu0 0.0
    %242 = vmatprep.subr.mxu0 0.0
    %243 = vmatpush1.msra.mxu0 0.0
    %244 = vmatprep.subr.mxu0 0.0
    %245 = vmatpush1.msra.mxu0 0.0
    %246 = vmatprep.subr.mxu0 0.0
    %247 = vmatpush1.msra.mxu0 0.0
    %248 = vmatprep.subr.mxu0 0.0
    %249 = vmatpush1.msra.mxu0 0.0
    %250 = vmatprep.subr.mxu0 0.0
    %251 = vmatpush1.msra.mxu0 0.0
    %252 = vmatprep.subr.mxu0 0.0
    %253 = vmatpush1.msra.mxu0 0.0
    %254 = vmatprep.mubr.f32.mxu0 0.0
    %255 = vmatmul.mubr.f32.gmra.mrb[0].mxu0 %v173
    %v256 = vpop.f32.mrb[0].mxu0
    %v257 = vadd.f32 %v171, %v256
    %v258 = vpop.f32.mrb[0].mxu0
    %259 = vdwg.mxu0
    %v260 = vmax.f32 %v257, 0.0
    %261 = vst [vmem:[#allocation8] sm:$0xff] %v260
    // Predicated region
    $region30: #{tpu_custom_call.1} parent=1 // pred_check
      _
    $region31: #{tpu_custom_call.1} parent=1 // pred_check_branch
      %263 = sbr.rel (0) target = $region33
    $region32: #{tpu_custom_call.1} parent=1 // pred_region
      %s265 = ssub.s32 128, 128
      %266 = vsyncadd [#allocation4], %s265
      %s268 = sshll.u32 [#allocation8], 4
      %s269 = int_to_ptr.vmem [resolvable:$true] %s268
      %271 = dma.vmem_to_hbm [thread:$0]  %s269, 128, %s4, [#allocation4]
    $region33: #{tpu_custom_call.1} parent=1 // pred_fallthru
      _
    // Predicated region
    $region34: #{tpu_custom_call.1} parent=1 // pred_check
      _
    $region35: #{tpu_custom_call.1} parent=1 // pred_check_branch
      %273 = sbr.rel (0) target = $region37
    $region36: #{tpu_custom_call.1} parent=1 // pred_region
      %274 = dma.done [#allocation4], 128
    $region37: #{tpu_custom_call.1} parent=1 // pred_fallthru
      _
    %275 = vsyncpa [#allocation3], 1
    %276 = vsyncpa [#allocation6], 1
    %277 = vsyncpa [#allocation4], 1

</llo_original>
